<compile_context>
chip_gen: v5e
topology: v5e:2x2
jax: 0.10.0
libtpu: 0.0.40
codegen_flags: <defaults>
</compile_context>

<pallas_src>
import functools

import jax
import jax.numpy as jnp
from jax.experimental import pallas as pl
from jax.experimental.pallas import tpu as pltpu

_LANE = 128


def _layernorm_affine_kernel(w_ref, b_ref, x_ref, o_ref, *, eps):
    # x_ref: (Bb, C, Tt) -- reduce over C (axis=1, the sublane axis)
    # w_ref, b_ref: (1, C, 1) f32 -- grid-invariant, broadcast over batch/lanes
    x = x_ref[...].astype(jnp.float32)
    mu = jnp.mean(x, axis=1, keepdims=True)
    res = x - mu
    sigma = jnp.mean(res * res, axis=1, keepdims=True)
    out = res * jax.lax.rsqrt(sigma + eps)
    out = out * w_ref[...] + b_ref[...]
    o_ref[...] = out.astype(o_ref.dtype)


def _layernorm_plain_kernel(x_ref, o_ref, *, eps):
    x = x_ref[...].astype(jnp.float32)
    mu = jnp.mean(x, axis=1, keepdims=True)
    res = x - mu
    sigma = jnp.mean(res * res, axis=1, keepdims=True)
    o_ref[...] = (res * jax.lax.rsqrt(sigma + eps)).astype(o_ref.dtype)


def _tpu_generation():
    """Best-effort TPU generation (7, 6, 5, ...); 0 if unknown."""
    try:
        kind = jax.devices()[0].device_kind.lower()
    except Exception:
        return 0
    for g in (7, 6, 5, 4, 3):
        if (f"v{g}" in kind) or (f"tpu{g}" in kind):
            return g
    return 0


def _choose_tiles(B, C, T, itemsize, target_block_bytes):
    """Pick (Bb, Tt) so the x block stays within target_block_bytes.

    Tt is a multiple of 128 (lane-dense stores) whenever T >= 128; ragged T is
    handled with a masked partial last tile via pl.cdiv. For T < 128 the only
    legal lane extent is the full dim (see TODO above).
    """
    if T < _LANE:
        Tt = T
    else:
        t_budget = max(_LANE, (target_block_bytes // (C * itemsize)) // _LANE * _LANE)
        Tt = min(t_budget, (T // _LANE) * _LANE)
    Bb = max(1, min(B, target_block_bytes // max(1, C * Tt * itemsize)))
    return Bb, Tt


def layer_norm(x, weight=None, bias=None, *, eps=1e-5):
    """Pallas implementation of LayerNorm.forward for x of shape (B, C, T).

    weight/bias: optional (1, C, 1) affine parameters (affine=False if None).
    """
    B, C, T = x.shape
    dtype = x.dtype
    itemsize = jnp.dtype(dtype).itemsize
    affine = weight is not None

    gen = _tpu_generation()
    # Per-generation x-block byte target (review: 4 MiB v7x, 2 MiB v6e,
    # 1 MiB v5e/unknown keeps the 0.35us/step overhead amortized at each
    # generation's HBM bandwidth without risking scoped-VMEM overflow).
    if gen >= 7:
        target_block_bytes = 4 << 20
    elif gen == 6:
        target_block_bytes = 2 << 20
    else:
        target_block_bytes = 1 << 20

    Bb, Tt = _choose_tiles(B, C, T, itemsize, target_block_bytes)

    # v7x has 2 TensorCores: make sure a non-trivial workload has >= 2 grid
    # steps on the "parallel" axes so both cores (and DMA engines) are busy.
    if gen >= 7:
        total_bytes = B * C * T * itemsize
        if pl.cdiv(B, Bb) * pl.cdiv(T, Tt) < 2 and total_bytes >= (512 << 10):
            if B >= 2:
                Bb = (B + 1) // 2
            elif Tt >= 2 * _LANE:
                Tt = max(_LANE, (Tt // 2) // _LANE * _LANE)
                Bb = max(1, min(B, target_block_bytes // max(1, C * Tt * itemsize)))

    grid = (pl.cdiv(B, Bb), pl.cdiv(T, Tt))

    # Explicit scoped-VMEM budget: 2x double-buffered (x + out) blocks plus
    # ~3 block-sized f32 intermediates (x_f32, res, out) plus slack for the
    # tiny params / stats. Cap below physical VMEM (64 MiB/TC on v7x).
    x_blk = Bb * C * Tt * itemsize
    f32_blk = Bb * C * Tt * 4
    vmem_limit = 2 * 2 * x_blk + 3 * f32_blk + (4 << 20)
    vmem_limit = max(32 << 20, vmem_limit)
    vmem_limit = min(vmem_limit, (48 << 20) if gen >= 7 else (100 << 20))
    vmem_limit = int(vmem_limit)

    x_spec = pl.BlockSpec((Bb, C, Tt), lambda i, j: (i, 0, j))
    out_spec = pl.BlockSpec((Bb, C, Tt), lambda i, j: (i, 0, j))
    compiler_params = pltpu.CompilerParams(
        dimension_semantics=("parallel", "parallel"),
        vmem_limit_bytes=vmem_limit,
    )

    if affine:
        # Pre-cast to f32 once in the wrapper (removes per-step in-kernel casts).
        w = jnp.asarray(weight, jnp.float32).reshape(1, C, 1)
        b = (jnp.zeros((1, C, 1), jnp.float32) if bias is None
             else jnp.asarray(bias, jnp.float32).reshape(1, C, 1))
        kernel = functools.partial(_layernorm_affine_kernel, eps=float(eps))
        in_specs = [
            pl.BlockSpec((1, C, 1), lambda i, j: (0, 0, 0)),  # weight (grid-invariant)
            pl.BlockSpec((1, C, 1), lambda i, j: (0, 0, 0)),  # bias   (grid-invariant)
            x_spec,
        ]
        args = (w, b, x)
    else:
        kernel = functools.partial(_layernorm_plain_kernel, eps=float(eps))
        in_specs = [x_spec]
        args = (x,)

    return pl.pallas_call(
        kernel,
        out_shape=jax.ShapeDtypeStruct((B, C, T), dtype),
        grid_spec=pltpu.PrefetchScalarGridSpec(
            num_scalar_prefetch=0,
            grid=grid,
            in_specs=in_specs,
            out_specs=out_spec,
        ),
        compiler_params=compiler_params,
    )(*args)


if __name__ == "__main__":
    key = jax.random.PRNGKey(0)
    kx, kw, kb, kx2 = jax.random.split(key, 4)

    eps = 1e-5

    def ref_ln(x, w=None, b=None):
        mu = jnp.mean(x, axis=1, keepdims=True)
        res = x - mu
        sigma = jnp.mean(res * res, axis=1, keepdims=True)
        out = res / jnp.sqrt(sigma + eps)
        if w is not None:
            out = out * w + b
        return out

    # Case 1: module-like small shape (B, C, T) = (2, 4, 16), affine and not.
    B, C, T = 2, 4, 16
    x = jax.random.normal(kx, (B, C, T), dtype=jnp.float32)
    weight = 1.0 + 0.1 * jax.random.normal(kw, (1, C, 1), dtype=jnp.float32)
    bias = 0.1 * jax.random.normal(kb, (1, C, 1), dtype=jnp.float32)

    out_affine = jax.block_until_ready(layer_norm(x, weight, bias, eps=eps))
    assert jnp.allclose(out_affine, ref_ln(x, weight, bias), atol=1e-5, rtol=1e-5), \
        "affine layer-norm mismatch"

    out_plain = jax.block_until_ready(layer_norm(x, eps=eps))
    assert jnp.allclose(out_plain, ref_ln(x), atol=1e-5, rtol=1e-5), \
        "non-affine layer-norm mismatch"

    # Case 2: ragged T >= 128 exercises lane-dense 128-wide tiles plus the
    # masked partial last tile path.
    B2, C2, T2 = 2, 8, 160
    x2 = jax.random.normal(kx2, (B2, C2, T2), dtype=jnp.float32)
    out2 = jax.block_until_ready(layer_norm(x2, eps=eps))
    assert jnp.allclose(out2, ref_ln(x2), atol=1e-5, rtol=1e-5), \
        "ragged-T layer-norm mismatch"

    print("KERNEL_OK")
</pallas_src>

<mosaic_0001>
module attributes {stable_mosaic.version = 11 : i64} {
  func.func @_layernorm_affine_kernel(%arg0: i32, %arg1: i32, %arg2: memref<1x4x1xf32, #tpu.memory_space<vmem>>, %arg3: memref<1x4x1xf32, #tpu.memory_space<vmem>>, %arg4: memref<2x4x16xf32, #tpu.memory_space<vmem>>, %arg5: memref<2x4x16xf32, #tpu.memory_space<vmem>>) attributes {dimension_semantics = [#tpu.dimension_semantics<parallel>, #tpu.dimension_semantics<parallel>], iteration_bounds = array<i64: 1, 1>, scalar_prefetch = 0 : i64, scratch_operands = 0 : i64, tpu.core_type = #tpu.core_type<tc>, window_params = [{pipeline_mode = #tpu.pipeline_mode<synchronous>, transform_indices = @transform_0, window_bounds = array<i64: 1, 4, 1>}, {pipeline_mode = #tpu.pipeline_mode<synchronous>, transform_indices = @transform_1, window_bounds = array<i64: 1, 4, 1>}, {transform_indices = @transform_2, window_bounds = array<i64: 2, 4, 16>}, {transform_indices = @transform_3, window_bounds = array<i64: 2, 4, 16>}]} {
    %c0 = arith.constant 0 : index
    %c0_0 = arith.constant 0 : index
    %c0_1 = arith.constant 0 : index
    %0 = vector.load %arg4[%c0, %c0_0, %c0_1] : memref<2x4x16xf32, #tpu.memory_space<vmem>>, vector<2x4x16xf32>
    %cst = arith.constant dense<0.000000e+00> : vector<2x16xf32>
    %1 = vector.multi_reduction <add>, %0, %cst [1] : vector<2x4x16xf32> to vector<2x16xf32>
    %2 = vector.shape_cast %1 : vector<2x16xf32> to vector<2x1x16xf32>
    %cst_2 = arith.constant 4.000000e+00 : f32
    %3 = vector.broadcast %cst_2 : f32 to vector<2x1x16xf32>
    %4 = arith.divf %2, %3 : vector<2x1x16xf32>
    %5 = vector.broadcast %4 : vector<2x1x16xf32> to vector<2x4x16xf32>
    %6 = arith.subf %0, %5 : vector<2x4x16xf32>
    %7 = arith.mulf %6, %6 : vector<2x4x16xf32>
    %cst_3 = arith.constant dense<0.000000e+00> : vector<2x16xf32>
    %8 = vector.multi_reduction <add>, %7, %cst_3 [1] : vector<2x4x16xf32> to vector<2x16xf32>
    %9 = vector.shape_cast %8 : vector<2x16xf32> to vector<2x1x16xf32>
    %cst_4 = arith.constant 4.000000e+00 : f32
    %10 = vector.broadcast %cst_4 : f32 to vector<2x1x16xf32>
    %11 = arith.divf %9, %10 : vector<2x1x16xf32>
    %cst_5 = arith.constant 9.99999974E-6 : f32
    %12 = vector.broadcast %cst_5 : f32 to vector<2x1x16xf32>
    %13 = arith.addf %11, %12 : vector<2x1x16xf32>
    %14 = math.rsqrt %13 : vector<2x1x16xf32>
    %15 = vector.broadcast %14 : vector<2x1x16xf32> to vector<2x4x16xf32>
    %16 = arith.mulf %6, %15 : vector<2x4x16xf32>
    %c0_6 = arith.constant 0 : index
    %c0_7 = arith.constant 0 : index
    %c0_8 = arith.constant 0 : index
    %17 = vector.load %arg2[%c0_6, %c0_7, %c0_8] : memref<1x4x1xf32, #tpu.memory_space<vmem>>, vector<1x4x1xf32>
    %18 = vector.broadcast %17 : vector<1x4x1xf32> to vector<2x4x16xf32>
    %19 = arith.mulf %16, %18 : vector<2x4x16xf32>
    %c0_9 = arith.constant 0 : index
    %c0_10 = arith.constant 0 : index
    %c0_11 = arith.constant 0 : index
    %20 = vector.load %arg3[%c0_9, %c0_10, %c0_11] : memref<1x4x1xf32, #tpu.memory_space<vmem>>, vector<1x4x1xf32>
    %21 = vector.broadcast %20 : vector<1x4x1xf32> to vector<2x4x16xf32>
    %22 = arith.addf %19, %21 : vector<2x4x16xf32>
    %c0_12 = arith.constant 0 : index
    %c0_13 = arith.constant 0 : index
    %c0_14 = arith.constant 0 : index
    %23 = vector.load %arg5[%c0_12, %c0_13, %c0_14] : memref<2x4x16xf32, #tpu.memory_space<vmem>>, vector<2x4x16xf32>
    tpu.vector_store %arg5[%c0_12, %c0_13, %c0_14], %22 {strides = array<i32>} : memref<2x4x16xf32, #tpu.memory_space<vmem>>, vector<2x4x16xf32>,
    return
  }
  func.func @transform_0(%arg0: i32, %arg1: i32) -> (i32, i32, i32) {
    %c0_i32 = arith.constant 0 : i32
    %c0_i32_0 = arith.constant 0 : i32
    %c0_i32_1 = arith.constant 0 : i32
    %c0_i32_2 = arith.constant 0 : i32
    return %c0_i32, %c0_i32_0, %c0_i32_1 : i32, i32, i32
  }
  func.func @transform_1(%arg0: i32, %arg1: i32) -> (i32, i32, i32) {
    %c0_i32 = arith.constant 0 : i32
    %c0_i32_0 = arith.constant 0 : i32
    %c0_i32_1 = arith.constant 0 : i32
    %c0_i32_2 = arith.constant 0 : i32
    return %c0_i32, %c0_i32_0, %c0_i32_1 : i32, i32, i32
  }
  func.func @transform_2(%arg0: i32, %arg1: i32) -> (i32, i32, i32) {
    %c0_i32 = arith.constant 0 : i32
    %c0_i32_0 = arith.constant 0 : i32
    return %arg0, %c0_i32, %arg1 : i32, i32, i32
  }
  func.func @transform_3(%arg0: i32, %arg1: i32) -> (i32, i32, i32) {
    %c0_i32 = arith.constant 0 : i32
    %c0_i32_0 = arith.constant 0 : i32
    return %arg0, %c0_i32, %arg1 : i32, i32, i32
  }
}

</mosaic_0001>

<llo_original>
// kernel: tpu_custom_call.1
$region0: #{tpu_custom_call.1}
  #allocation0 [shape = 'u32[]', space=smem, size = 0x4, offset = 0x4, fixed_abs, tag = 'smem constant byte address 0x4 - core index']
  #allocation1 [shape = 'u32[72,128]{1,0:T(1,128)}', space=vmem, size = 0x9000, scoped, tag = 'internal scratch']
  %s0 = inlined_call_operand.vmem [shape: f32[1,4,1], index: 0, kind: input, shape index: {}]
  %s1 = inlined_call_operand.vmem [shape: f32[1,4,1], index: 1, kind: input, shape index: {}]
  %s2 = inlined_call_operand.vmem [shape: f32[2,4,16], index: 2, kind: input, shape index: {}]
  %s3 = inlined_call_operand.hbm [shape: f32[2,4,16], index: 3, kind: output, shape index: {}]
  %s4 = sld [smem:[#allocation0]]
  $region22: #{tpu_custom_call.1} parent=0
    _
  %s6 = ssub.s32 1, %s4
  %s7 = scalar_select 0, %s6, %s4
  $region1: #{tpu_custom_call.1} parent=0
    #allocation2 [shape = 'u8[4096]{0}', space=vmem, size = 0x1000, scoped, tag = 'output window, operand 0, single buffered']
    #allocation3 [shape = 's32[1]{0}', space=sflag, size = 0x4, scoped, tag = 'scoped memory for tpu_custom_call.1']
    %8 = vsyncpa [#allocation3], 0
    // Predicated region
    $region2: #{tpu_custom_call.1} parent=1 // pred_check
      _
    $region3: #{tpu_custom_call.1} parent=1 // pred_check_branch
      %10 = sbr.rel (0) target = $region5
    $region4: #{tpu_custom_call.1} parent=1 // pred_region
      _
    $region5: #{tpu_custom_call.1} parent=1 // pred_fallthru
      _
    // Predicated region
    $region6: #{tpu_custom_call.1} parent=1 // pred_check
      _
    $region7: #{tpu_custom_call.1} parent=1 // pred_check_branch
      %12 = sbr.rel (0) target = $region9
    $region8: #{tpu_custom_call.1} parent=1 // pred_region
      _
    $region9: #{tpu_custom_call.1} parent=1 // pred_fallthru
      _
    // Predicated region
    $region10: #{tpu_custom_call.1} parent=1 // pred_check
      _
    $region11: #{tpu_custom_call.1} parent=1 // pred_check_branch
      %14 = sbr.rel (0) target = $region13
    $region12: #{tpu_custom_call.1} parent=1 // pred_region
      _
    $region13: #{tpu_custom_call.1} parent=1 // pred_fallthru
      _
    %v15 = vld [vmem:[%s2] sm:$0xf]
    %v16 = vld [vmem:[%s2 + $0x4] sm:$0xf]
    %vm17 = vcmask 125952
    %v18 = vsel %vm17, %v15, 0.0
    %v19 = vrot.slane %v18, 4
    %v20 = vadd.f32 %v18, %v19
    %v21 = vrot.slane %v20, 2
    %v22 = vadd.f32 %v20, %v21
    %v23 = vrot.slane %v22, 1
    %v24 = vadd.f32 %v22, %v23
    %v25 = vsel %vm17, %v16, 0.0
    %v26 = vrot.slane %v25, 4
    %v27 = vadd.f32 %v25, %v26
    %v28 = vrot.slane %v27, 2
    %v29 = vadd.f32 %v27, %v28
    %v30 = vrot.slane %v29, 1
    %v31 = vadd.f32 %v29, %v30
    %v32 = vrcp.pop 4.0
    %v33 = vmul.f32 4.0, %v32
    %v34 = vsub.f32 1.0, %v33
    %v35 = vmul.f32 %v32, %v34
    %v36 = vadd.f32 %v32, %v35
    %vm37 = vweird.f32 %v32
    %v38 = vsel %vm37, %v32, %v36
    %v39 = vmul.f32 %v24, %v38
    %v40 = vmul.f32 %v31, %v38
    %v41 = vsub.f32 %v15, %v39
    %v42 = vsub.f32 %v16, %v40
    %v43 = vmul.f32 %v41, %v41
    %v44 = vmul.f32 %v42, %v42
    %v45 = vsel %vm17, %v43, 0.0
    %v46 = vrot.slane %v45, 4
    %v47 = vadd.f32 %v45, %v46
    %v48 = vrot.slane %v47, 2
    %v49 = vadd.f32 %v47, %v48
    %v50 = vrot.slane %v49, 1
    %v51 = vadd.f32 %v49, %v50
    %v52 = vsel %vm17, %v44, 0.0
    %v53 = vrot.slane %v52, 4
    %v54 = vadd.f32 %v52, %v53
    %v55 = vrot.slane %v54, 2
    %v56 = vadd.f32 %v54, %v55
    %v57 = vrot.slane %v56, 1
    %v58 = vadd.f32 %v56, %v57
    %v59 = vmul.f32 %v51, %v38
    %v60 = vmul.f32 %v58, %v38
    %v61 = vadd.f32 %v59, 1e-05
    %v62 = vadd.f32 %v60, 1e-05
    %v63 = vrsqrt.pop %v61
    %v64 = vmul.f32 %v63, %v61
    %v65 = vmul.f32 %v64, %v63
    %v66 = vmul.f32 0.5, %v65
    %v67 = vsub.f32 1.5, %v66
    %v68 = vmul.f32 %v63, %v67
    %vm69 = vweird.f32 %v61
    %vm70 = vweird.f32 %v63
    %vm71 = vmor %vm69, %vm70
    %v72 = vsel %vm71, %v63, %v68
    %v73 = vrsqrt.pop %v62
    %v74 = vmul.f32 %v73, %v62
    %v75 = vmul.f32 %v74, %v73
    %v76 = vmul.f32 0.5, %v75
    %v77 = vsub.f32 1.5, %v76
    %v78 = vmul.f32 %v73, %v77
    %vm79 = vweird.f32 %v62
    %vm80 = vweird.f32 %v73
    %vm81 = vmor %vm79, %vm80
    %v82 = vsel %vm81, %v73, %v78
    %v83 = vmul.f32 %v41, %v72
    %v84 = vmul.f32 %v42, %v82
    %v85 = vld [vmem:[%s0] sm:$0xf]
    %87 = vset.pattern.permute.xlu0 0
    %88 = vperm.xlu0 %87, %v85
    %v89 = vpop.permute.xlu0 %88
    %v91 = vmul.f32 %v83, %v89
    %v92 = vmul.f32 %v84, %v89
    %v93 = vld [vmem:[%s1] sm:$0xf]
    %95 = vset.pattern.permute.xlu0 0
    %96 = vperm.xlu0 %95, %v93
    %v97 = vpop.permute.xlu0 %96
    %v99 = vadd.f32 %v91, %v97
    %v100 = vadd.f32 %v92, %v97
    %101 = vst.msk [vmem:[#allocation2] sm:$0xf] %vm17, %v99
    %102 = vst.msk [vmem:[#allocation2 + $0x4] sm:$0xf] %vm17, %v100
    // Predicated region
    $region14: #{tpu_custom_call.1} parent=1 // pred_check
      _
    $region15: #{tpu_custom_call.1} parent=1 // pred_check_branch
      %104 = sbr.rel (0) target = $region17
    $region16: #{tpu_custom_call.1} parent=1 // pred_region
      %106 = vsyncadd [#allocation3], 0
      %s107 = sshll.u32 [#allocation2], 4
      %s108 = int_to_ptr.vmem [resolvable:$true] %s107
      %s109 = sshll.u32 %s3, 4
      %s110 = int_to_ptr.hbm [resolvable:$true] %s109
      %115 = dma.vmem_to_hbm [thread:$0]  %s108, 128, %s110, [#allocation3], 64, 64, 4
    $region17: #{tpu_custom_call.1} parent=1 // pred_fallthru
      _
    // Predicated region
    $region18: #{tpu_custom_call.1} parent=1 // pred_check
      _
    $region19: #{tpu_custom_call.1} parent=1 // pred_check_branch
      %117 = sbr.rel (0) target = $region21
    $region20: #{tpu_custom_call.1} parent=1 // pred_region
      %119 = dma.done [#allocation3], 128
    $region21: #{tpu_custom_call.1} parent=1 // pred_fallthru
      _
    %120 = vsyncpa [#allocation3], 1

</llo_original>
